<compile_context>
chip_gen: v5e
topology: v5e:2x2
jax: 0.10.0
libtpu: 0.0.40
codegen_flags: <defaults>
</compile_context>

<pallas_src>
import jax
import jax.numpy as jnp
from jax.experimental import pallas as pl
from jax.experimental.pallas import tpu as pltpu


_LANES = 128
_SUBLANES = 8
_TILE = _SUBLANES * _LANES          # one (8, 128) f32 tile = 1024 elements

_VMEM = pl.BlockSpec(memory_space=pltpu.MemorySpace.VMEM)
_SMEM = pl.BlockSpec(memory_space=pltpu.MemorySpace.SMEM)


def _round_up(n, m):
    return ((n + m - 1) // m) * m


def _pack_2d(x):
    """Flatten -> zero-pad to a 1024 multiple -> lane/sublane-dense (rows, 128)."""
    flat = x.reshape(-1).astype(jnp.float32)
    npad = _round_up(flat.shape[0], _TILE)
    flat = jnp.pad(flat, (0, npad - flat.shape[0]))
    return flat.reshape(npad // _LANES, _LANES)


def _pack_batched(x):
    """(B, ...) -> (B, rows, 128): per-batch flatten + zero-pad to a 1024 multiple."""
    b = x.shape[0]
    flat = x.reshape(b, -1).astype(jnp.float32)
    npad = _round_up(flat.shape[1], _TILE)
    flat = jnp.pad(flat, ((0, 0), (0, npad - flat.shape[1])))
    return flat.reshape(b, npad // _LANES, _LANES)


# ----------------------------- Pallas kernels -------------------------------

def _reduce_2d(a, b):
    """a, b: (rows, 128) -> (1, 3) = (dot, ||a||^2, ||b||^2). Lane reduce then
    sublane reduce; zero padding contributes nothing."""
    dot = jnp.sum(jnp.sum(a * b, axis=1, keepdims=True), axis=0, keepdims=True)
    na2 = jnp.sum(jnp.sum(a * a, axis=1, keepdims=True), axis=0, keepdims=True)
    nb2 = jnp.sum(jnp.sum(b * b, axis=1, keepdims=True), axis=0, keepdims=True)
    return jnp.concatenate([dot, na2, nb2], axis=1)            # (1, 3)


def _reduce_3d(a, b):
    """a, b: (B, rows, 128) -> (1, 3) global reductions (slerp uses one global angle)."""
    def _r(x):
        s = jnp.sum(x, axis=2)                                 # (B, rows)
        s = jnp.sum(s, axis=1, keepdims=True)                  # (B, 1)
        return jnp.sum(s, axis=0, keepdims=True)               # (1, 1)
    return jnp.concatenate([_r(a * b), _r(a * a), _r(b * b)], axis=1)


def _fwd_reduce_kernel(ca_ref, cb_ref, la_ref, lb_ref, red_ref):
    """Batched slerp reductions for the forward pass.
    Row 0: condition <-> target_condition (2-D pack).
    Row 1: target_init_latents <-> initial_latents (3-D batch pack)."""
    red_ref[0:1, :] = _reduce_2d(ca_ref[...], cb_ref[...])
    red_ref[1:2, :] = _reduce_3d(la_ref[...], lb_ref[...])


def _fwd_combine_score_kernel(coef_ref, ca_ref, cb_ref, la_ref, lb_ref, tgt_ref,
                              cond_ref, lat_ref, score_ref):
    """Fused forward kernel: both slerp combines + cosine score of slerped latents.
    coef: (2, 2) f32 in SMEM. score = 10000 * cosine(slerped_latents, target_latents)
    per batch row.
    TODO(synk): reference accumulates the cosine in float64; TPU has no f64, so f32."""
    cond_ref[...] = coef_ref[0, 0] * ca_ref[...] + coef_ref[0, 1] * cb_ref[...]

    lat = coef_ref[1, 0] * la_ref[...] + coef_ref[1, 1] * lb_ref[...]   # (B, rows, 128)
    lat_ref[...] = lat

    tgt = tgt_ref[...]
    dot = jnp.sum(jnp.sum(lat * tgt, axis=2), axis=1, keepdims=True)    # (B, 1)
    nx2 = jnp.sum(jnp.sum(lat * lat, axis=2), axis=1, keepdims=True)
    ny2 = jnp.sum(jnp.sum(tgt * tgt, axis=2), axis=1, keepdims=True)
    # rsqrt (EUP) replaces sqrt + divide; 1e-16 floor == torch's 1e-8 eps on the norm.
    score_ref[...] = 10000.0 * dot * jax.lax.rsqrt(jnp.maximum(nx2 * ny2, 1e-16))


def _pair_reduce_kernel(a_ref, b_ref, red_ref):
    """Single-pair slerp reductions (used by get_text_embedding)."""
    red_ref[...] = _reduce_2d(a_ref[...], b_ref[...])           # (1, 3)


def _pair_combine_kernel(coef_ref, a_ref, b_ref, out_ref):
    """out = c0*a + c1*b with scalar coefficients read from SMEM."""
    out_ref[...] = coef_ref[0, 0] * a_ref[...] + coef_ref[0, 1] * b_ref[...]


def _cosine_score_kernel(x_ref, y_ref, o_ref):
    """Per-batch 10000 * cosine similarity of two (B, rows, 128) packs."""
    x = x_ref[...]
    y = y_ref[...]
    dot = jnp.sum(jnp.sum(x * y, axis=2), axis=1, keepdims=True)
    nx2 = jnp.sum(jnp.sum(x * x, axis=2), axis=1, keepdims=True)
    ny2 = jnp.sum(jnp.sum(y * y, axis=2), axis=1, keepdims=True)
    o_ref[...] = 10000.0 * dot * jax.lax.rsqrt(jnp.maximum(nx2 * ny2, 1e-16))


# ------------------------------ JAX glue -------------------------------------

def _slerp_coeffs(red, t):
    """Scalar slerp coefficient math (ldm.slerp semantics: one global angle,
    lerp fallback when nearly parallel). red: (n, 3), t: (n,) -> (n, 2)."""
    dot, na2, nb2 = red[:, 0], red[:, 1], red[:, 2]
    cos_omega = jnp.clip(dot * jax.lax.rsqrt(jnp.maximum(na2 * nb2, 1e-30)), -1.0, 1.0)
    omega = jnp.arccos(cos_omega)
    so = jnp.sin(omega)
    use_lerp = jnp.abs(cos_omega) > 0.9995
    safe_so = jnp.where(use_lerp, 1.0, so)
    c0 = jnp.where(use_lerp, 1.0 - t, jnp.sin((1.0 - t) * omega) / safe_so)
    c1 = jnp.where(use_lerp, t, jnp.sin(t * omega) / safe_so)
    return jnp.stack([c0, c1], axis=-1).astype(jnp.float32)


@jax.jit
def _slerp_impl(a, b, t):
    """Single-pair global slerp: one reduce pallas_call + one combine pallas_call."""
    ap = _pack_2d(a)
    bp = _pack_2d(b)
    red = pl.pallas_call(
        _pair_reduce_kernel,
        out_shape=jax.ShapeDtypeStruct((1, 3), jnp.float32),
        in_specs=[_VMEM, _VMEM],
        out_specs=_VMEM,
    )(ap, bp)
    coef = _slerp_coeffs(red, jnp.reshape(jnp.asarray(t, jnp.float32), (1,)))  # (1, 2)
    out = pl.pallas_call(
        _pair_combine_kernel,
        out_shape=jax.ShapeDtypeStruct(ap.shape, jnp.float32),
        in_specs=[_SMEM, _VMEM, _VMEM],
        out_specs=_VMEM,
    )(coef, ap, bp)
    return out.reshape(-1)[: a.size].reshape(a.shape).astype(a.dtype)


def slerp(a, b, t):
    return _slerp_impl(a, b, t)


@jax.jit
def compute_dist_metric(target_latents, latents):
    """Standalone score path (forward uses the fused kernel instead)."""
    tgt = _pack_batched(target_latents)
    lat = _pack_batched(latents)
    score = pl.pallas_call(
        _cosine_score_kernel,
        out_shape=jax.ShapeDtypeStruct((tgt.shape[0], 1), jnp.float32),
        in_specs=[_VMEM, _VMEM],
        out_specs=_VMEM,
    )(lat, tgt)
    return score[:, 0]


@jax.jit
def _forward_impl(condition_mid, target_condition_mid, target_init_latents,
                  target_latents, initial_latents, alpha, val):
    # Pack each operand once; both pallas_calls consume the same packed arrays.
    ca = _pack_2d(condition_mid)                 # (Rc, 128)
    cb = _pack_2d(target_condition_mid)
    la = _pack_batched(target_init_latents)      # (B, Rl, 128)
    lb = _pack_batched(initial_latents)
    tgt = _pack_batched(target_latents)

    # --- pallas_call #1: batched slerp reductions -> single (2, 3) output.
    red = pl.pallas_call(
        _fwd_reduce_kernel,
        out_shape=jax.ShapeDtypeStruct((2, 3), jnp.float32),
        in_specs=[_VMEM, _VMEM, _VMEM, _VMEM],
        out_specs=_VMEM,
    )(ca, cb, la, lb)

    ts = jnp.stack([jax.nn.sigmoid(alpha).astype(jnp.float32),
                    jnp.asarray(val, jnp.float32)])
    coeffs = _slerp_coeffs(red, ts)              # (2, 2), lives in SMEM inside kernel 2

    # --- pallas_call #2: fused combine (both slerps) + cosine score.
    cond_out, lat_out, score = pl.pallas_call(
        _fwd_combine_score_kernel,
        out_shape=(jax.ShapeDtypeStruct(ca.shape, jnp.float32),
                   jax.ShapeDtypeStruct(la.shape, jnp.float32),
                   jax.ShapeDtypeStruct((la.shape[0], 1), jnp.float32)),
        in_specs=[_SMEM, _VMEM, _VMEM, _VMEM, _VMEM, _VMEM],
        out_specs=(_VMEM, _VMEM, _VMEM),
    )(coeffs, ca, cb, la, lb, tgt)

    # cond_out / lat_out are what the reference feeds into ldm.embedding_2_img;
    # with return_latents_step=0 the denoiser is a pass-through stand-in, so only
    # the score reaches the caller.
    del cond_out, lat_out
    return score[:, 0]


# ------------------------------ Module port ----------------------------------

class GradientDescent:
    """JAX/Pallas port of the PyTorch GradientDescent module."""

    def __init__(self, condition, target_condition, target_latents,
                 target_init_latents, val, uncondition):
        self.condition_row = condition[:, :1, :]          # [B, 1, D]
        self.condition = condition[:, 1:, :]              # [B, S-1, D]
        self.target_init_latents = target_init_latents    # [B, C, H, W]
        self.target_condition = target_condition[:, 1:, :]
        # TODO(synk): ldm.text_enc(['']) is a CLIP text encoder with no Pallas
        # equivalent; a deterministic synthetic unconditional embedding is used.
        self.uncondition = uncondition                    # [B, S, D]
        self.latents = None
        self.target_latents = target_latents              # [B, C, H, W]
        self.alpha = jnp.float32(-5.0)                    # nn.Parameter(tensor(-5.0))
        self.default_std = jnp.std(self.condition, ddof=1)
        self.default_mean = jnp.mean(self.condition)
        self.val = jnp.float32(val)

    def get_text_embedding(self):
        cond_mid = slerp(self.condition, self.target_condition,
                         jax.nn.sigmoid(self.alpha))
        cond = jnp.concatenate([self.condition_row, cond_mid], axis=1)
        return jnp.concatenate([self.uncondition, cond], axis=0)

    def forward(self, initial_latents):
        # TODO(synk): ldm.embedding_2_img (UNet + scheduler denoising loop) has no
        # Pallas equivalent; with return_latents_step=0 the returned latents are the
        # slerped initial latents, which stand in for the diffusion output.
        return _forward_impl(self.condition, self.target_condition,
                             self.target_init_latents, self.target_latents,
                             initial_latents, self.alpha, self.val)


# --------------------------------- Main ---------------------------------------

if __name__ == "__main__":
    key = jax.random.PRNGKey(0)
    kc, ktc, ktl, ktil, kil, kun = jax.random.split(key, 6)

    B, S, D = 2, 8, 32      # text-embedding shape [B, S, D]
    C, H, W = 4, 16, 16     # latents NCHW [B, C, H, W]

    condition = jax.random.normal(kc, (B, S, D), jnp.float32)
    target_condition = jax.random.normal(ktc, (B, S, D), jnp.float32)
    target_latents = jax.random.normal(ktl, (B, C, H, W), jnp.float32)
    target_init_latents = jax.random.normal(ktil, (B, C, H, W), jnp.float32)
    initial_latents = jax.random.normal(kil, (B, C, H, W), jnp.float32)
    uncondition = jax.random.normal(kun, (B, S, D), jnp.float32)
    val = 0.5

    gd = GradientDescent(condition, target_condition, target_latents,
                         target_init_latents, val, uncondition)
    score = gd.forward(initial_latents)                       # fused 2-kernel path
    text_embedding = gd.get_text_embedding()                  # single-pair slerp path
    standalone = compute_dist_metric(target_latents, initial_latents)
    jax.block_until_ready((score, text_embedding, standalone))
    print("KERNEL_OK")
</pallas_src>

<mosaic_0001>
module attributes {stable_mosaic.version = 11 : i64} {
  func.func @_fwd_reduce_kernel(%arg0: memref<8x128xf32, #tpu.memory_space<vmem>>, %arg1: memref<8x128xf32, #tpu.memory_space<vmem>>, %arg2: memref<2x8x128xf32, #tpu.memory_space<vmem>>, %arg3: memref<2x8x128xf32, #tpu.memory_space<vmem>>, %arg4: memref<2x3xf32, #tpu.memory_space<vmem>>) attributes {dimension_semantics = [], scalar_prefetch = 0 : i64, scratch_operands = 0 : i64, tpu.core_type = #tpu.core_type<tc>} {
    %c0 = arith.constant 0 : index
    %c0_0 = arith.constant 0 : index
    %0 = vector.load %arg0[%c0, %c0_0] : memref<8x128xf32, #tpu.memory_space<vmem>>, vector<8x128xf32>
    %c0_1 = arith.constant 0 : index
    %c0_2 = arith.constant 0 : index
    %1 = vector.load %arg1[%c0_1, %c0_2] : memref<8x128xf32, #tpu.memory_space<vmem>>, vector<8x128xf32>
    %2 = arith.mulf %0, %1 : vector<8x128xf32>
    %cst = arith.constant dense<0.000000e+00> : vector<8xf32>
    %3 = vector.multi_reduction <add>, %2, %cst [1] : vector<8x128xf32> to vector<8xf32>
    %4 = vector.shape_cast %3 : vector<8xf32> to vector<8x1xf32>
    %cst_3 = arith.constant dense<0.000000e+00> : vector<1xf32>
    %5 = vector.multi_reduction <add>, %4, %cst_3 [0] : vector<8x1xf32> to vector<1xf32>
    %6 = vector.shape_cast %5 : vector<1xf32> to vector<1x1xf32>
    %7 = arith.mulf %0, %0 : vector<8x128xf32>
    %cst_4 = arith.constant dense<0.000000e+00> : vector<8xf32>
    %8 = vector.multi_reduction <add>, %7, %cst_4 [1] : vector<8x128xf32> to vector<8xf32>
    %9 = vector.shape_cast %8 : vector<8xf32> to vector<8x1xf32>
    %cst_5 = arith.constant dense<0.000000e+00> : vector<1xf32>
    %10 = vector.multi_reduction <add>, %9, %cst_5 [0] : vector<8x1xf32> to vector<1xf32>
    %11 = vector.shape_cast %10 : vector<1xf32> to vector<1x1xf32>
    %12 = arith.mulf %1, %1 : vector<8x128xf32>
    %cst_6 = arith.constant dense<0.000000e+00> : vector<8xf32>
    %13 = vector.multi_reduction <add>, %12, %cst_6 [1] : vector<8x128xf32> to vector<8xf32>
    %14 = vector.shape_cast %13 : vector<8xf32> to vector<8x1xf32>
    %cst_7 = arith.constant dense<0.000000e+00> : vector<1xf32>
    %15 = vector.multi_reduction <add>, %14, %cst_7 [0] : vector<8x1xf32> to vector<1xf32>
    %16 = vector.shape_cast %15 : vector<1xf32> to vector<1x1xf32>
    %17 = tpu.concatenate %6, %11, %16 in 1 : vector<1x1xf32>, vector<1x1xf32>, vector<1x1xf32> -> vector<1x3xf32>
    %c0_8 = arith.constant 0 : index
    %c0_9 = arith.constant 0 : index
    %18 = vector.load %arg4[%c0_8, %c0_9] : memref<2x3xf32, #tpu.memory_space<vmem>>, vector<1x3xf32>
    tpu.vector_store %arg4[%c0_8, %c0_9], %17 {strides = array<i32>} : memref<2x3xf32, #tpu.memory_space<vmem>>, vector<1x3xf32>,
    %c0_10 = arith.constant 0 : index
    %c0_11 = arith.constant 0 : index
    %c0_12 = arith.constant 0 : index
    %19 = vector.load %arg2[%c0_10, %c0_11, %c0_12] : memref<2x8x128xf32, #tpu.memory_space<vmem>>, vector<2x8x128xf32>
    %c0_13 = arith.constant 0 : index
    %c0_14 = arith.constant 0 : index
    %c0_15 = arith.constant 0 : index
    %20 = vector.load %arg3[%c0_13, %c0_14, %c0_15] : memref<2x8x128xf32, #tpu.memory_space<vmem>>, vector<2x8x128xf32>
    %21 = arith.mulf %19, %20 : vector<2x8x128xf32>
    %cst_16 = arith.constant dense<0.000000e+00> : vector<2x8xf32>
    %22 = vector.multi_reduction <add>, %21, %cst_16 [2] : vector<2x8x128xf32> to vector<2x8xf32>
    %cst_17 = arith.constant dense<0.000000e+00> : vector<2xf32>
    %23 = vector.multi_reduction <add>, %22, %cst_17 [1] : vector<2x8xf32> to vector<2xf32>
    %24 = vector.shape_cast %23 : vector<2xf32> to vector<2x1xf32>
    %cst_18 = arith.constant dense<0.000000e+00> : vector<1xf32>
    %25 = vector.multi_reduction <add>, %24, %cst_18 [0] : vector<2x1xf32> to vector<1xf32>
    %26 = vector.shape_cast %25 : vector<1xf32> to vector<1x1xf32>
    %27 = arith.mulf %19, %19 : vector<2x8x128xf32>
    %cst_19 = arith.constant dense<0.000000e+00> : vector<2x8xf32>
    %28 = vector.multi_reduction <add>, %27, %cst_19 [2] : vector<2x8x128xf32> to vector<2x8xf32>
    %cst_20 = arith.constant dense<0.000000e+00> : vector<2xf32>
    %29 = vector.multi_reduction <add>, %28, %cst_20 [1] : vector<2x8xf32> to vector<2xf32>
    %30 = vector.shape_cast %29 : vector<2xf32> to vector<2x1xf32>
    %cst_21 = arith.constant dense<0.000000e+00> : vector<1xf32>
    %31 = vector.multi_reduction <add>, %30, %cst_21 [0] : vector<2x1xf32> to vector<1xf32>
    %32 = vector.shape_cast %31 : vector<1xf32> to vector<1x1xf32>
    %33 = arith.mulf %20, %20 : vector<2x8x128xf32>
    %cst_22 = arith.constant dense<0.000000e+00> : vector<2x8xf32>
    %34 = vector.multi_reduction <add>, %33, %cst_22 [2] : vector<2x8x128xf32> to vector<2x8xf32>
    %cst_23 = arith.constant dense<0.000000e+00> : vector<2xf32>
    %35 = vector.multi_reduction <add>, %34, %cst_23 [1] : vector<2x8xf32> to vector<2xf32>
    %36 = vector.shape_cast %35 : vector<2xf32> to vector<2x1xf32>
    %cst_24 = arith.constant dense<0.000000e+00> : vector<1xf32>
    %37 = vector.multi_reduction <add>, %36, %cst_24 [0] : vector<2x1xf32> to vector<1xf32>
    %38 = vector.shape_cast %37 : vector<1xf32> to vector<1x1xf32>
    %39 = tpu.concatenate %26, %32, %38 in 1 : vector<1x1xf32>, vector<1x1xf32>, vector<1x1xf32> -> vector<1x3xf32>
    %c1 = arith.constant 1 : index
    %c0_25 = arith.constant 0 : index
    %40 = vector.load %arg4[%c1, %c0_25] : memref<2x3xf32, #tpu.memory_space<vmem>>, vector<1x3xf32>
    tpu.vector_store %arg4[%c1, %c0_25], %39 {strides = array<i32>} : memref<2x3xf32, #tpu.memory_space<vmem>>, vector<1x3xf32>,
    return
  }
}

module attributes {stable_mosaic.version = 11 : i64} {
  func.func @_fwd_combine_score_kernel(%arg0: memref<2x2xf32, #tpu.memory_space<smem>>, %arg1: memref<8x128xf32, #tpu.memory_space<vmem>>, %arg2: memref<8x128xf32, #tpu.memory_space<vmem>>, %arg3: memref<2x8x128xf32, #tpu.memory_space<vmem>>, %arg4: memref<2x8x128xf32, #tpu.memory_space<vmem>>, %arg5: memref<2x8x128xf32, #tpu.memory_space<vmem>>, %arg6: memref<8x128xf32, #tpu.memory_space<vmem>>, %arg7: memref<2x8x128xf32, #tpu.memory_space<vmem>>, %arg8: memref<2x1xf32, #tpu.memory_space<vmem>>) attributes {dimension_semantics = [], scalar_prefetch = 0 : i64, scratch_operands = 0 : i64, tpu.core_type = #tpu.core_type<tc>} {
    %c0 = arith.constant 0 : index
    %c0_0 = arith.constant 0 : index
    %0 = memref.load %arg0[%c0, %c0_0] : memref<2x2xf32, #tpu.memory_space<smem>>
    %c0_1 = arith.constant 0 : index
    %c0_2 = arith.constant 0 : index
    %1 = vector.load %arg1[%c0_1, %c0_2] : memref<8x128xf32, #tpu.memory_space<vmem>>, vector<8x128xf32>
    %2 = vector.broadcast %0 : f32 to vector<8x128xf32>
    %3 = arith.mulf %2, %1 : vector<8x128xf32>
    %c0_3 = arith.constant 0 : index
    %c1 = arith.constant 1 : index
    %4 = memref.load %arg0[%c0_3, %c1] : memref<2x2xf32, #tpu.memory_space<smem>>
    %c0_4 = arith.constant 0 : index
    %c0_5 = arith.constant 0 : index
    %5 = vector.load %arg2[%c0_4, %c0_5] : memref<8x128xf32, #tpu.memory_space<vmem>>, vector<8x128xf32>
    %6 = vector.broadcast %4 : f32 to vector<8x128xf32>
    %7 = arith.mulf %6, %5 : vector<8x128xf32>
    %8 = arith.addf %3, %7 : vector<8x128xf32>
    %c0_6 = arith.constant 0 : index
    %c0_7 = arith.constant 0 : index
    %9 = vector.load %arg6[%c0_6, %c0_7] : memref<8x128xf32, #tpu.memory_space<vmem>>, vector<8x128xf32>
    tpu.vector_store %arg6[%c0_6, %c0_7], %8 {strides = array<i32>} : memref<8x128xf32, #tpu.memory_space<vmem>>, vector<8x128xf32>,
    %c1_8 = arith.constant 1 : index
    %c0_9 = arith.constant 0 : index
    %10 = memref.load %arg0[%c1_8, %c0_9] : memref<2x2xf32, #tpu.memory_space<smem>>
    %c0_10 = arith.constant 0 : index
    %c0_11 = arith.constant 0 : index
    %c0_12 = arith.constant 0 : index
    %11 = vector.load %arg3[%c0_10, %c0_11, %c0_12] : memref<2x8x128xf32, #tpu.memory_space<vmem>>, vector<2x8x128xf32>
    %12 = vector.broadcast %10 : f32 to vector<2x8x128xf32>
    %13 = arith.mulf %12, %11 : vector<2x8x128xf32>
    %c1_13 = arith.constant 1 : index
    %c1_14 = arith.constant 1 : index
    %14 = memref.load %arg0[%c1_13, %c1_14] : memref<2x2xf32, #tpu.memory_space<smem>>
    %c0_15 = arith.constant 0 : index
    %c0_16 = arith.constant 0 : index
    %c0_17 = arith.constant 0 : index
    %15 = vector.load %arg4[%c0_15, %c0_16, %c0_17] : memref<2x8x128xf32, #tpu.memory_space<vmem>>, vector<2x8x128xf32>
    %16 = vector.broadcast %14 : f32 to vector<2x8x128xf32>
    %17 = arith.mulf %16, %15 : vector<2x8x128xf32>
    %18 = arith.addf %13, %17 : vector<2x8x128xf32>
    %c0_18 = arith.constant 0 : index
    %c0_19 = arith.constant 0 : index
    %c0_20 = arith.constant 0 : index
    %19 = vector.load %arg7[%c0_18, %c0_19, %c0_20] : memref<2x8x128xf32, #tpu.memory_space<vmem>>, vector<2x8x128xf32>
    tpu.vector_store %arg7[%c0_18, %c0_19, %c0_20], %18 {strides = array<i32>} : memref<2x8x128xf32, #tpu.memory_space<vmem>>, vector<2x8x128xf32>,
    %c0_21 = arith.constant 0 : index
    %c0_22 = arith.constant 0 : index
    %c0_23 = arith.constant 0 : index
    %20 = vector.load %arg5[%c0_21, %c0_22, %c0_23] : memref<2x8x128xf32, #tpu.memory_space<vmem>>, vector<2x8x128xf32>
    %21 = arith.mulf %18, %20 : vector<2x8x128xf32>
    %cst = arith.constant dense<0.000000e+00> : vector<2x8xf32>
    %22 = vector.multi_reduction <add>, %21, %cst [2] : vector<2x8x128xf32> to vector<2x8xf32>
    %cst_24 = arith.constant dense<0.000000e+00> : vector<2xf32>
    %23 = vector.multi_reduction <add>, %22, %cst_24 [1] : vector<2x8xf32> to vector<2xf32>
    %24 = vector.shape_cast %23 : vector<2xf32> to vector<2x1xf32>
    %25 = arith.mulf %18, %18 : vector<2x8x128xf32>
    %cst_25 = arith.constant dense<0.000000e+00> : vector<2x8xf32>
    %26 = vector.multi_reduction <add>, %25, %cst_25 [2] : vector<2x8x128xf32> to vector<2x8xf32>
    %cst_26 = arith.constant dense<0.000000e+00> : vector<2xf32>
    %27 = vector.multi_reduction <add>, %26, %cst_26 [1] : vector<2x8xf32> to vector<2xf32>
    %28 = vector.shape_cast %27 : vector<2xf32> to vector<2x1xf32>
    %29 = arith.mulf %20, %20 : vector<2x8x128xf32>
    %cst_27 = arith.constant dense<0.000000e+00> : vector<2x8xf32>
    %30 = vector.multi_reduction <add>, %29, %cst_27 [2] : vector<2x8x128xf32> to vector<2x8xf32>
    %cst_28 = arith.constant dense<0.000000e+00> : vector<2xf32>
    %31 = vector.multi_reduction <add>, %30, %cst_28 [1] : vector<2x8xf32> to vector<2xf32>
    %32 = vector.shape_cast %31 : vector<2xf32> to vector<2x1xf32>
    %cst_29 = arith.constant 1.000000e+04 : f32
    %33 = vector.broadcast %cst_29 : f32 to vector<2x1xf32>
    %34 = arith.mulf %33, %24 : vector<2x1xf32>
    %35 = arith.mulf %28, %32 : vector<2x1xf32>
    %cst_30 = arith.constant 1.000000e-16 : f32
    %36 = vector.broadcast %cst_30 : f32 to vector<2x1xf32>
    %37 = arith.maximumf %35, %36 : vector<2x1xf32>
    %38 = math.rsqrt %37 : vector<2x1xf32>
    %39 = arith.mulf %34, %38 : vector<2x1xf32>
    %c0_31 = arith.constant 0 : index
    %c0_32 = arith.constant 0 : index
    %40 = vector.load %arg8[%c0_31, %c0_32] : memref<2x1xf32, #tpu.memory_space<vmem>>, vector<2x1xf32>
    tpu.vector_store %arg8[%c0_31, %c0_32], %39 {strides = array<i32>} : memref<2x1xf32, #tpu.memory_space<vmem>>, vector<2x1xf32>,
    return
  }
}

</mosaic_0001>

<llo_original>
// kernel: _forward_impl.2
$region0: #{_forward_impl.2}
  #allocation0 [shape = 'u32[]', space=smem, size = 0x4, offset = 0x4, fixed_abs, tag = 'smem constant byte address 0x4 - core index']
  #allocation1 [shape = 'u32[72,128]{1,0:T(1,128)}', space=vmem, size = 0x9000, scoped, tag = 'internal scratch']
  %s0 = inlined_call_operand.vmem [shape: f32[8,128], index: 0, kind: input, shape index: {}]
  %s1 = inlined_call_operand.vmem [shape: f32[8,128], index: 1, kind: input, shape index: {}]
  %s2 = inlined_call_operand.vmem [shape: f32[2,8,128], index: 2, kind: input, shape index: {}]
  %s3 = inlined_call_operand.vmem [shape: f32[2,8,128], index: 3, kind: input, shape index: {}]
  %s4 = inlined_call_operand.vmem [shape: f32[2,3], index: 4, kind: output, shape index: {}]
  %s5 = sld [smem:[#allocation0]]
  $region26: #{_forward_impl.2} parent=0
    _
  %s7 = ssub.s32 1, %s5
  %s8 = scalar_select 0, %s7, %s5
  // Predicated region
  $region2: #{_forward_impl.2} parent=0 // pred_check
    _
  $region3: #{_forward_impl.2} parent=0 // pred_check_branch
    %10 = sbr.rel (0) target = $region5
  $region4: #{_forward_impl.2} parent=0 // pred_region
    _
  $region5: #{_forward_impl.2} parent=0 // pred_fallthru
    _
  // Predicated region
  $region6: #{_forward_impl.2} parent=0 // pred_check
    _
  $region7: #{_forward_impl.2} parent=0 // pred_check_branch
    %12 = sbr.rel (0) target = $region9
  $region8: #{_forward_impl.2} parent=0 // pred_region
    _
  $region9: #{_forward_impl.2} parent=0 // pred_fallthru
    _
  // Predicated region
  $region10: #{_forward_impl.2} parent=0 // pred_check
    _
  $region11: #{_forward_impl.2} parent=0 // pred_check_branch
    %14 = sbr.rel (0) target = $region13
  $region12: #{_forward_impl.2} parent=0 // pred_region
    _
  $region13: #{_forward_impl.2} parent=0 // pred_fallthru
    _
  // Predicated region
  $region14: #{_forward_impl.2} parent=0 // pred_check
    _
  $region15: #{_forward_impl.2} parent=0 // pred_check_branch
    %16 = sbr.rel (0) target = $region17
  $region16: #{_forward_impl.2} parent=0 // pred_region
    _
  $region17: #{_forward_impl.2} parent=0 // pred_fallthru
    _
  %v17 = vld [vmem:[%s0] sm:$0xff]
  %v18 = vld [vmem:[%s1] sm:$0xff]
  %v19 = vmul.f32 %v17, %v18
  %20 = vadd.xlane.f32.xlu0 %v19
  %v21 = vpop.xlane.xlu0 %20
  %v22 = vrot.slane %v21, 4
  %v23 = vadd.f32 %v21, %v22
  %v24 = vrot.slane %v23, 2
  %v25 = vadd.f32 %v23, %v24
  %v26 = vrot.slane %v25, 1
  %v27 = vadd.f32 %v25, %v26
  %v28 = vmul.f32 %v17, %v17
  %29 = vadd.xlane.f32.xlu0 %v28
  %v30 = vpop.xlane.xlu0 %29
  %v31 = vrot.slane %v30, 4
  %v32 = vadd.f32 %v30, %v31
  %v33 = vrot.slane %v32, 2
  %v34 = vadd.f32 %v32, %v33
  %v35 = vrot.slane %v34, 1
  %v36 = vadd.f32 %v34, %v35
  %v37 = vmul.f32 %v18, %v18
  %38 = vadd.xlane.f32.xlu0 %v37
  %v39 = vpop.xlane.xlu0 %38
  %v40 = vrot.slane %v39, 4
  %v41 = vadd.f32 %v39, %v40
  %v42 = vrot.slane %v41, 2
  %v43 = vadd.f32 %v41, %v42
  %v44 = vrot.slane %v43, 1
  %v45 = vadd.f32 %v43, %v44
  %vm46 = vcmask 7168
  %v47 = vsel %vm46, %v27, %v36
  %vm48 = vcmask 15360
  %v49 = vsel %vm48, %v47, %v45
  %vm50 = vcmask 16384
  %51 = vst.msk [vmem:[%s4] sm:$0x1] %vm50, %v49
  %v52 = vld [vmem:[%s2] sm:$0xff]
  %v53 = vld [vmem:[%s2 + $0x8] sm:$0xff]
  %v54 = vld [vmem:[%s3] sm:$0xff]
  %v55 = vld [vmem:[%s3 + $0x8] sm:$0xff]
  %v56 = vmul.f32 %v52, %v54
  %v57 = vmul.f32 %v53, %v55
  %58 = vadd.xlane.f32.xlu0 %v56
  %v59 = vpop.xlane.xlu0 %58
  %60 = vadd.xlane.f32.xlu0 %v57
  %v61 = vpop.xlane.xlu0 %60
  %v64 = vlaneseq
  %v65 = vand.u32 %v64, 127
  %v66 = vperm.slane %v59, %v65
  %v67 = vperm.slane %v61, %v65
  %vm68 = vcmask 1041409
  %v69 = vsel %vm68, %v67, %v66
  %vm71 = vcmask 58368
  %v72 = vsel %vm71, %v69, 0.0
  %73 = vadd.xlane.f32.xlu0 %v72
  %v74 = vpop.xlane.xlu0 %73
  %vm75 = vcmask 1041408
  %v76 = vsel %vm75, %v74, 0.0
  %v77 = vrot.slane %v76, 4
  %v78 = vadd.f32 %v76, %v77
  %v79 = vrot.slane %v78, 2
  %v80 = vadd.f32 %v78, %v79
  %v81 = vrot.slane %v80, 1
  %v82 = vadd.f32 %v80, %v81
  %v83 = vmul.f32 %v52, %v52
  %v84 = vmul.f32 %v53, %v53
  %85 = vadd.xlane.f32.xlu0 %v83
  %v86 = vpop.xlane.xlu0 %85
  %87 = vadd.xlane.f32.xlu0 %v84
  %v88 = vpop.xlane.xlu0 %87
  %v91 = vperm.slane %v86, %v65
  %v92 = vperm.slane %v88, %v65
  %v93 = vsel %vm68, %v92, %v91
  %v95 = vsel %vm71, %v93, 0.0
  %96 = vadd.xlane.f32.xlu0 %v95
  %v97 = vpop.xlane.xlu0 %96
  %v98 = vsel %vm75, %v97, 0.0
  %v99 = vrot.slane %v98, 4
  %v100 = vadd.f32 %v98, %v99
  %v101 = vrot.slane %v100, 2
  %v102 = vadd.f32 %v100, %v101
  %v103 = vrot.slane %v102, 1
  %v104 = vadd.f32 %v102, %v103
  %v105 = vmul.f32 %v54, %v54
  %v106 = vmul.f32 %v55, %v55
  %107 = vadd.xlane.f32.xlu0 %v105
  %v108 = vpop.xlane.xlu0 %107
  %109 = vadd.xlane.f32.xlu0 %v106
  %v110 = vpop.xlane.xlu0 %109
  %v113 = vperm.slane %v108, %v65
  %v114 = vperm.slane %v110, %v65
  %v115 = vsel %vm68, %v114, %v113
  %v117 = vsel %vm71, %v115, 0.0
  %118 = vadd.xlane.f32.xlu0 %v117
  %v119 = vpop.xlane.xlu0 %118
  %v120 = vsel %vm75, %v119, 0.0
  %v121 = vrot.slane %v120, 4
  %v122 = vadd.f32 %v120, %v121
  %v123 = vrot.slane %v122, 2
  %v124 = vadd.f32 %v122, %v123
  %v125 = vrot.slane %v124, 1
  %v126 = vadd.f32 %v124, %v125
  %v127 = vsel %vm46, %v82, %v104
  %v128 = vsel %vm48, %v127, %v126
  %129 = vst.msk [vmem:[%s4 + $0x1] sm:$0x1] %vm50, %v128
  // Predicated region
  $region18: #{_forward_impl.2} parent=0 // pred_check
    _
  $region19: #{_forward_impl.2} parent=0 // pred_check_branch
    %131 = sbr.rel (0) target = $region21
  $region20: #{_forward_impl.2} parent=0 // pred_region
    _
  $region21: #{_forward_impl.2} parent=0 // pred_fallthru
    _
  // Predicated region
  $region22: #{_forward_impl.2} parent=0 // pred_check
    _
  $region23: #{_forward_impl.2} parent=0 // pred_check_branch
    %133 = sbr.rel (0) target = $region25
  $region24: #{_forward_impl.2} parent=0 // pred_region
    _
  $region25: #{_forward_impl.2} parent=0 // pred_fallthru
    _

// kernel: _forward_impl.3
$region0: #{_forward_impl.3}
  #allocation0 [shape = 'u32[]', space=smem, size = 0x4, offset = 0x4, fixed_abs, tag = 'smem constant byte address 0x4 - core index']
  #allocation1 [shape = 'u32[72,128]{1,0:T(1,128)}', space=vmem, size = 0x9000, scoped, tag = 'internal scratch']
  %s0 = inlined_call_operand.vmem [shape: f32[2,2], index: 0, kind: input, shape index: {}]
  %s1 = inlined_call_operand.vmem [shape: f32[8,128], index: 1, kind: input, shape index: {}]
  %s2 = inlined_call_operand.vmem [shape: f32[8,128], index: 2, kind: input, shape index: {}]
  %s3 = inlined_call_operand.vmem [shape: f32[2,8,128], index: 3, kind: input, shape index: {}]
  %s4 = inlined_call_operand.vmem [shape: f32[2,8,128], index: 4, kind: input, shape index: {}]
  %s5 = inlined_call_operand.vmem [shape: f32[2,8,128], index: 5, kind: input, shape index: {}]
  %s6 = inlined_call_operand.hbm [shape: f32[8,128], index: 6, kind: output, shape index: {0}]
  %s7 = inlined_call_operand.hbm [shape: f32[2,8,128], index: 7, kind: output, shape index: {1}]
  %s8 = inlined_call_operand.vmem [shape: f32[2,1], index: 8, kind: output, shape index: {2}]
  %9 = xla_tuple %s6, %s7, %s8
  %s10 = sld [smem:[#allocation0]]
  $region54: #{_forward_impl.3} parent=0
    _
  %s12 = ssub.s32 1, %s10
  %s13 = scalar_select 0, %s12, %s10
  $region1: #{_forward_impl.3} parent=0
    #allocation2 [shape = 'u8[1024]{0}', space=smem, size = 0x400, scoped, tag = 'input window, operand 0, single buffered']
    #allocation3 [shape = 's32[1]{0}', space=sflag, size = 0x4, scoped, tag = 'scoped memory for _forward_impl.3']
    #allocation4 [shape = 's32[1]{0}', space=sflag, size = 0x4, scoped, tag = 'scoped memory for _forward_impl.3']
    #allocation5 [shape = 'u8[4096]{0}', space=vmem, size = 0x1000, scoped, tag = 'output window, operand 0, single buffered']
    #allocation6 [shape = 'u8[8192]{0}', space=vmem, size = 0x2000, scoped, tag = 'output window, operand 1, single buffered']
    #allocation7 [shape = 's32[1]{0}', space=sflag, size = 0x4, scoped, tag = 'scoped memory for _forward_impl.3']
    %14 = vsyncpa [#allocation4], 0
    %15 = vsyncpa [#allocation3], 0
    %16 = vsyncpa [#allocation7], 0
    // Predicated region
    $region2: #{_forward_impl.3} parent=1 // pred_check
      _
    $region3: #{_forward_impl.3} parent=1 // pred_check_branch
      %18 = sbr.rel (0) target = $region5
    $region4: #{_forward_impl.3} parent=1 // pred_region
      %20 = vsyncadd [#allocation4], 0
      %s22 = sshll.u32 %s0, 4
      %s23 = int_to_ptr.vmem [resolvable:$true] %s22
      %25 = dma.vmem_to_smem %s23, 32, [#allocation2], [#allocation4]
    $region5: #{_forward_impl.3} parent=1 // pred_fallthru
      _
    // Predicated region
    $region6: #{_forward_impl.3} parent=1 // pred_check
      _
    $region7: #{_forward_impl.3} parent=1 // pred_check_branch
      %27 = sbr.rel (0) target = $region9
    $region8: #{_forward_impl.3} parent=1 // pred_region
      _
    $region9: #{_forward_impl.3} parent=1 // pred_fallthru
      _
    // Predicated region
    $region10: #{_forward_impl.3} parent=1 // pred_check
      _
    $region11: #{_forward_impl.3} parent=1 // pred_check_branch
      %29 = sbr.rel (0) target = $region13
    $region12: #{_forward_impl.3} parent=1 // pred_region
      _
    $region13: #{_forward_impl.3} parent=1 // pred_fallthru
      _
    // Predicated region
    $region14: #{_forward_impl.3} parent=1 // pred_check
      _
    $region15: #{_forward_impl.3} parent=1 // pred_check_branch
      %31 = sbr.rel (0) target = $region17
    $region16: #{_forward_impl.3} parent=1 // pred_region
      _
    $region17: #{_forward_impl.3} parent=1 // pred_fallthru
      _
    // Predicated region
    $region18: #{_forward_impl.3} parent=1 // pred_check
      _
    $region19: #{_forward_impl.3} parent=1 // pred_check_branch
      %33 = sbr.rel (0) target = $region21
    $region20: #{_forward_impl.3} parent=1 // pred_region
      _
    $region21: #{_forward_impl.3} parent=1 // pred_fallthru
      _
    // Predicated region
    $region22: #{_forward_impl.3} parent=1 // pred_check
      _
    $region23: #{_forward_impl.3} parent=1 // pred_check_branch
      %35 = sbr.rel (0) target = $region25
    $region24: #{_forward_impl.3} parent=1 // pred_region
      _
    $region25: #{_forward_impl.3} parent=1 // pred_fallthru
      _
    // Predicated region
    $region26: #{_forward_impl.3} parent=1 // pred_check
      _
    $region27: #{_forward_impl.3} parent=1 // pred_check_branch
      %37 = sbr.rel (0) target = $region29
    $region28: #{_forward_impl.3} parent=1 // pred_region
      %39 = dma.done [#allocation4], 32
    $region29: #{_forward_impl.3} parent=1 // pred_fallthru
      _
    %40 = sfence
    %s41 = sld [smem:[#allocation2]]
    %v42 = vld [vmem:[%s1] sm:$0xff]
    %v43 = vstv %s41
    %v44 = vmul.f32 %v43, %v42
    %s45 = sld [smem:[#allocation2 + $0x1]]
    %v46 = vld [vmem:[%s2] sm:$0xff]
    %v47 = vstv %s45
    %v48 = vmul.f32 %v47, %v46
    %v49 = vadd.f32 %v44, %v48
    %50 = vst [vmem:[#allocation5] sm:$0xff] %v49
    %s51 = sld [smem:[#allocation2 + $0x80]]
    %v52 = vld [vmem:[%s3] sm:$0xff]
    %v53 = vld [vmem:[%s3 + $0x8] sm:$0xff]
    %v54 = vstv %s51
    %v55 = vmul.f32 %v54, %v52
    %v56 = vmul.f32 %v54, %v53
    %s57 = sld [smem:[#allocation2 + $0x81]]
    %v58 = vld [vmem:[%s4] sm:$0xff]
    %v59 = vld [vmem:[%s4 + $0x8] sm:$0xff]
    %v60 = vstv %s57
    %v61 = vmul.f32 %v60, %v58
    %v62 = vmul.f32 %v60, %v59
    %v63 = vadd.f32 %v55, %v61
    %v64 = vadd.f32 %v56, %v62
    %65 = vst [vmem:[#allocation6] sm:$0xff] %v63
    %66 = vst [vmem:[#allocation6 + $0x8] sm:$0xff] %v64
    %v67 = vld [vmem:[%s5] sm:$0xff]
    %v68 = vld [vmem:[%s5 + $0x8] sm:$0xff]
    %v69 = vmul.f32 %v63, %v67
    %v70 = vmul.f32 %v64, %v68
    %71 = vadd.xlane.f32.xlu0 %v69
    %v72 = vpop.xlane.xlu0 %71
    %73 = vadd.xlane.f32.xlu0 %v70
    %v74 = vpop.xlane.xlu0 %73
    %v77 = vlaneseq
    %v78 = vand.u32 %v77, 127
    %v79 = vperm.slane %v72, %v78
    %v80 = vperm.slane %v74, %v78
    %vm81 = vcmask 1041409
    %v82 = vsel %vm81, %v80, %v79
    %vm84 = vcmask 58368
    %v85 = vsel %vm84, %v82, 0.0
    %86 = vadd.xlane.f32.xlu0 %v85
    %v87 = vpop.xlane.xlu0 %86
    %v88 = vmul.f32 %v63, %v63
    %v89 = vmul.f32 %v64, %v64
    %90 = vadd.xlane.f32.xlu0 %v88
    %v91 = vpop.xlane.xlu0 %90
    %92 = vadd.xlane.f32.xlu0 %v89
    %v93 = vpop.xlane.xlu0 %92
    %v96 = vperm.slane %v91, %v78
    %v97 = vperm.slane %v93, %v78
    %v98 = vsel %vm81, %v97, %v96
    %v100 = vsel %vm84, %v98, 0.0
    %101 = vadd.xlane.f32.xlu0 %v100
    %v102 = vpop.xlane.xlu0 %101
    %v103 = vmul.f32 %v67, %v67
    %v104 = vmul.f32 %v68, %v68
    %105 = vadd.xlane.f32.xlu0 %v103
    %v106 = vpop.xlane.xlu0 %105
    %107 = vadd.xlane.f32.xlu0 %v104
    %v108 = vpop.xlane.xlu0 %107
    %v111 = vperm.slane %v106, %v78
    %v112 = vperm.slane %v108, %v78
    %v113 = vsel %vm81, %v112, %v111
    %v115 = vsel %vm84, %v113, 0.0
    %116 = vadd.xlane.f32.xlu0 %v115
    %v117 = vpop.xlane.xlu0 %116
    %v118 = vmul.f32 %v87, 10000.0
    %v119 = vmul.f32 %v102, %v117
    %v120 = vmax.f32 %v119, 1e-16
    %v121 = vrsqrt.pop %v120
    %v122 = vmul.f32 %v121, %v120
    %v123 = vmul.f32 %v122, %v121
    %v124 = vmul.f32 0.5, %v123
    %v125 = vsub.f32 1.5, %v124
    %v126 = vmul.f32 %v121, %v125
    %vm127 = vweird.f32 %v120
    %vm128 = vweird.f32 %v121
    %vm129 = vmor %vm127, %vm128
    %v130 = vsel %vm129, %v121, %v126
    %v131 = vmul.f32 %v118, %v130
    %vm132 = vcmask 1024
    %133 = vst.msk [vmem:[%s8] sm:$0x3] %vm132, %v131
    // Predicated region
    $region30: #{_forward_impl.3} parent=1 // pred_check
      _
    $region31: #{_forward_impl.3} parent=1 // pred_check_branch
      %135 = sbr.rel (0) target = $region33
    $region32: #{_forward_impl.3} parent=1 // pred_region
      %137 = vsyncadd [#allocation3], 0
      %s139 = sshll.u32 [#allocation5], 4
      %s140 = int_to_ptr.vmem [resolvable:$true] %s139
      %s141 = sshll.u32 %s6, 4
      %s142 = int_to_ptr.hbm [resolvable:$true] %s141
      %144 = dma.vmem_to_hbm [thread:$0]  %s140, 128, %s142, [#allocation3]
    $region33: #{_forward_impl.3} parent=1 // pred_fallthru
      _
    // Predicated region
    $region34: #{_forward_impl.3} parent=1 // pred_check
      _
    $region35: #{_forward_impl.3} parent=1 // pred_check_branch
      %146 = sbr.rel (0) target = $region37
    $region36: #{_forward_impl.3} parent=1 // pred_region
      %148 = vsyncadd [#allocation7], 0
      %s149 = sshll.u32 [#allocation6], 4
      %s150 = int_to_ptr.vmem [resolvable:$true] %s149
      %s151 = sshll.u32 %s7, 4
      %s152 = int_to_ptr.hbm [resolvable:$true] %s151
      %157 = dma.vmem_to_hbm [thread:$0]  %s150, 256, %s152, [#allocation7], 128, 128, 8
    $region37: #{_forward_impl.3} parent=1 // pred_fallthru
      _
    // Predicated region
    $region38: #{_forward_impl.3} parent=1 // pred_check
      _
    $region39: #{_forward_impl.3} parent=1 // pred_check_branch
      %159 = sbr.rel (0) target = $region41
    $region40: #{_forward_impl.3} parent=1 // pred_region
      _
    $region41: #{_forward_impl.3} parent=1 // pred_fallthru
      _
    // Predicated region
    $region42: #{_forward_impl.3} parent=1 // pred_check
      _
    $region43: #{_forward_impl.3} parent=1 // pred_check_branch
      %161 = sbr.rel (0) target = $region45
    $region44: #{_forward_impl.3} parent=1 // pred_region
      %163 = dma.done [#allocation3], 128
    $region45: #{_forward_impl.3} parent=1 // pred_fallthru
      _
    // Predicated region
    $region46: #{_forward_impl.3} parent=1 // pred_check
      _
    $region47: #{_forward_impl.3} parent=1 // pred_check_branch
      %165 = sbr.rel (0) target = $region49
    $region48: #{_forward_impl.3} parent=1 // pred_region
      %167 = dma.done [#allocation7], 256
    $region49: #{_forward_impl.3} parent=1 // pred_fallthru
      _
    // Predicated region
    $region50: #{_forward_impl.3} parent=1 // pred_check
      _
    $region51: #{_forward_impl.3} parent=1 // pred_check_branch
      %169 = sbr.rel (0) target = $region53
    $region52: #{_forward_impl.3} parent=1 // pred_region
      _
    $region53: #{_forward_impl.3} parent=1 // pred_fallthru
      _
    %170 = vsyncpa [#allocation3], 1
    %171 = vsyncpa [#allocation7], 1
    %172 = vsyncpa [#allocation4], 1

</llo_original>
